<compile_context>
chip_gen: v7x
topology: tpu7x:2x2x1
jax: 0.10.0
libtpu: 0.0.40
codegen_flags: <defaults>
</compile_context>

<pallas_src>
import functools
import math

import jax
import jax.numpy as jnp
from jax.experimental import pallas as pl
from jax.experimental.pallas import tpu as pltpu

_LANES = 128
_MAX_BLOCK_ROWS = 2048  # 2048*128*4B = 1 MiB per operand block


def _mse_kernel(x_ref, t_ref, loss_ref, acc_ref, *, inv_n):
    """Accumulate sum((x - t)^2) over the 'arbitrary' grid axis (axis 1)."""
    j = pl.program_id(1)

    @pl.when(j == 0)
    def _():
        acc_ref[...] = jnp.zeros_like(acc_ref)

    d = x_ref[...].astype(jnp.float32) - t_ref[...].astype(jnp.float32)
    dd = d * d
    # Fold the (block_rows, 128) tile into the resident (8, 128) accumulator:
    # elementwise VPU adds only, no per-step cross-lane reduction.
    acc_ref[...] += jnp.sum(dd.reshape(-1, 8, _LANES), axis=0)

    @pl.when(j == pl.num_programs(1) - 1)
    def _():
        # Single cross-lane/sublane reduction per grid part.
        total = jnp.sum(acc_ref[...]) * inv_n
        loss_ref[...] = total.reshape(1, 1, 1)


def _layout(shape):
    """Static tiling decisions derived from the (shared) input/target shape."""
    n = math.prod(shape)
    rows = pl.cdiv(n, _LANES)
    block_rows = min(_MAX_BLOCK_ROWS, pl.cdiv(rows, 8) * 8)  # multiple of 8
    rows_padded = pl.cdiv(rows, block_rows) * block_rows
    total_blocks = rows_padded // block_rows
    # Split across the two v7x TensorCores when it divides evenly (avoids any
    # extra padding copy); on single-TC v5e/v6e the 'parallel' axis simply
    # runs serially with no overhead.
    num_parts = 2 if (total_blocks >= 2 and total_blocks % 2 == 0) else 1
    return n, rows_padded, block_rows, total_blocks // num_parts, num_parts


def _to_slab(a, rows_padded):
    """Flatten to a lane-dense (rows_padded, 128) slab; pad only if needed."""
    n = a.size
    flat = a.reshape(-1)
    pad = rows_padded * _LANES - n
    if pad:
        # Zero pad on BOTH operands => padded diff is exactly zero; mean uses
        # the true n, so the result is unaffected.
        flat = jnp.pad(flat, (0, pad))
    return flat.reshape(rows_padded, _LANES)


def _content_mse_impl(x, target):
    n, rows_padded, block_rows, blocks_per_part, num_parts = _layout(x.shape)
    x2d = _to_slab(x, rows_padded)
    t2d = _to_slab(target, rows_padded)

    kernel = functools.partial(_mse_kernel, inv_n=1.0 / float(n))
    in_map = lambda c, j: (c * blocks_per_part + j, 0)

    partials = pl.pallas_call(
        kernel,
        out_shape=jax.ShapeDtypeStruct((num_parts, 1, 1), jnp.float32),
        grid_spec=pltpu.PrefetchScalarGridSpec(
            num_scalar_prefetch=0,
            grid=(num_parts, blocks_per_part),
            in_specs=[
                pl.BlockSpec((block_rows, _LANES), in_map),
                pl.BlockSpec((block_rows, _LANES), in_map),
            ],
            out_specs=pl.BlockSpec((1, 1, 1), lambda c, j: (c, 0, 0)),
            scratch_shapes=[pltpu.VMEM((8, _LANES), jnp.float32)],
        ),
        compiler_params=pltpu.CompilerParams(
            dimension_semantics=("parallel", "arbitrary"),
        ),
    )(x2d, t2d)

    return jnp.sum(partials)


@jax.custom_vjp
def content_mse(x, target):
    """mean((x - target)^2), computed by the Pallas kernel. Differentiable."""
    return _content_mse_impl(x, target)


def _content_mse_fwd(x, target):
    return _content_mse_impl(x, target), (x, target)


def _content_mse_bwd(res, g):
    x, target = res
    scale = 2.0 / float(math.prod(x.shape))
    diff = x.astype(jnp.float32) - target.astype(jnp.float32)
    gx = (g * scale) * diff
    return gx.astype(x.dtype), (-gx).astype(target.dtype)


content_mse.defvjp(_content_mse_fwd, _content_mse_bwd)

_content_mse_jit = jax.jit(content_mse)


class ContentLoss:
    """JAX/Pallas port of the PyTorch ContentLoss module.

    Note: like the PyTorch original, `self.loss` is set as a Python side
    effect of __call__; inside an outer jit/grad trace prefer the functional
    `content_mse(x, target)` instead of reading the attribute.
    """

    def __init__(self, target):
        self.target = jax.lax.stop_gradient(target)  # target.detach()
        self.loss = jnp.float32(0.0)                 # F.mse_loss(t, t) == 0

    def __call__(self, x):
        self.loss = _content_mse_jit(x, self.target)
        return x  # pass-through, exactly like the PyTorch module


if __name__ == "__main__":
    key = jax.random.PRNGKey(0)
    k_in, k_tgt = jax.random.split(key)

    # Small NCHW feature map consistent with the module.
    shape = (2, 4, 16, 16)
    x = jax.random.normal(k_in, shape, dtype=jnp.float32)
    target = jax.random.normal(k_tgt, shape, dtype=jnp.float32)

    module = ContentLoss(target)
    out = module(x)
    out = jax.block_until_ready(out)
    loss = jax.block_until_ready(module.loss)

    # Reference checks (plain JAX).
    ref_loss = jnp.mean((x - target) ** 2)
    assert out.shape == x.shape and out.dtype == x.dtype
    assert bool(jnp.all(out == x)), "forward must return its input unchanged"
    assert jnp.allclose(loss, ref_loss, rtol=1e-6, atol=1e-6), (loss, ref_loss)

    # Gradient path via custom_vjp: dL/dx = 2*(x - target)/n.
    g = jax.block_until_ready(jax.grad(content_mse)(x, target))
    ref_g = 2.0 * (x - target) / x.size
    assert jnp.allclose(g, ref_g, rtol=1e-5, atol=1e-6)

    print("KERNEL_OK")
</pallas_src>

<mosaic_0001>
module attributes {stable_mosaic.version = 11 : i64} {
  func.func @_mse_kernel(%arg0: i32, %arg1: i32, %arg2: memref<16x128xf32, #tpu.memory_space<vmem>>, %arg3: memref<16x128xf32, #tpu.memory_space<vmem>>, %arg4: memref<1x1x1xf32, #tpu.memory_space<vmem>>, %arg5: memref<8x128xf32, #tpu.memory_space<vmem>>) attributes {dimension_semantics = [#tpu.dimension_semantics<parallel>, #tpu.dimension_semantics<arbitrary>], iteration_bounds = array<i64: 1, 1>, scalar_prefetch = 0 : i64, scratch_operands = 1 : i64, tpu.core_type = #tpu.core_type<tc>, window_params = [{transform_indices = @transform_0, window_bounds = array<i64: 16, 128>}, {transform_indices = @transform_1, window_bounds = array<i64: 16, 128>}, {transform_indices = @transform_2, window_bounds = array<i64: 1, 1, 1>}]} {
    %c0_i32 = arith.constant 0 : i32
    %0 = arith.cmpi eq, %arg1, %c0_i32 : i32
    %1 = arith.extui %0 : i1 to i32
    %c0_i32_0 = arith.constant 0 : i32
    %2 = arith.cmpi ne, %1, %c0_i32_0 : i32
    scf.if %2 {
      %cst_10 = arith.constant 0.000000e+00 : f32
      %15 = vector.broadcast %cst_10 : f32 to vector<8x128xf32>
      %c0_11 = arith.constant 0 : index
      %c0_12 = arith.constant 0 : index
      %16 = vector.load %arg5[%c0_11, %c0_12] : memref<8x128xf32, #tpu.memory_space<vmem>>, vector<8x128xf32>
      tpu.vector_store %arg5[%c0_11, %c0_12], %15 {strides = array<i32>} : memref<8x128xf32, #tpu.memory_space<vmem>>, vector<8x128xf32>,
    } else {
    }
    %c0 = arith.constant 0 : index
    %c0_1 = arith.constant 0 : index
    %3 = vector.load %arg2[%c0, %c0_1] : memref<16x128xf32, #tpu.memory_space<vmem>>, vector<16x128xf32>
    %c0_2 = arith.constant 0 : index
    %c0_3 = arith.constant 0 : index
    %4 = vector.load %arg3[%c0_2, %c0_3] : memref<16x128xf32, #tpu.memory_space<vmem>>, vector<16x128xf32>
    %5 = arith.subf %3, %4 : vector<16x128xf32>
    %6 = arith.mulf %5, %5 : vector<16x128xf32>
    %c0_4 = arith.constant 0 : index
    %c0_5 = arith.constant 0 : index
    %7 = vector.load %arg5[%c0_4, %c0_5] : memref<8x128xf32, #tpu.memory_space<vmem>>, vector<8x128xf32>
    %8 = vector.shape_cast %6 : vector<16x128xf32> to vector<2x8x128xf32>
    %cst = arith.constant dense<0.000000e+00> : vector<8x128xf32>
    %9 = vector.multi_reduction <add>, %8, %cst [0] : vector<2x8x128xf32> to vector<8x128xf32>
    %10 = arith.addf %7, %9 : vector<8x128xf32>
    %c0_6 = arith.constant 0 : index
    %c0_7 = arith.constant 0 : index
    %11 = vector.load %arg5[%c0_6, %c0_7] : memref<8x128xf32, #tpu.memory_space<vmem>>, vector<8x128xf32>
    tpu.vector_store %arg5[%c0_6, %c0_7], %10 {strides = array<i32>} : memref<8x128xf32, #tpu.memory_space<vmem>>, vector<8x128xf32>,
    %c0_i32_8 = arith.constant 0 : i32
    %12 = arith.cmpi eq, %arg1, %c0_i32_8 : i32
    %13 = arith.extui %12 : i1 to i32
    %c0_i32_9 = arith.constant 0 : i32
    %14 = arith.cmpi ne, %13, %c0_i32_9 : i32
    scf.if %14 {
      %c0_10 = arith.constant 0 : index
      %c0_11 = arith.constant 0 : index
      %15 = vector.load %arg5[%c0_10, %c0_11] : memref<8x128xf32, #tpu.memory_space<vmem>>, vector<8x128xf32>
      %16 = vector.shape_cast %15 : vector<8x128xf32> to vector<1x8x128xf32>
      %cst_12 = arith.constant dense<0.000000e+00> : vector<1xf32>
      %17 = vector.multi_reduction <add>, %16, %cst_12 [1, 2] : vector<1x8x128xf32> to vector<1xf32>
      %18 = vector.shape_cast %17 : vector<1xf32> to vector<1x1x1xf32>
      %19 = vector.extract %18[0, 0, 0] : f32 from vector<1x1x1xf32>
      %cst_13 = arith.constant 4.8828125E-4 : f32
      %20 = arith.mulf %19, %cst_13 : f32
      %21 = vector.broadcast %20 : f32 to vector<1x1x1xf32>
      %c0_14 = arith.constant 0 : index
      %c0_15 = arith.constant 0 : index
      %c0_16 = arith.constant 0 : index
      %22 = vector.load %arg4[%c0_14, %c0_15, %c0_16] : memref<1x1x1xf32, #tpu.memory_space<vmem>>, vector<1x1x1xf32>
      tpu.vector_store %arg4[%c0_14, %c0_15, %c0_16], %21 {strides = array<i32>} : memref<1x1x1xf32, #tpu.memory_space<vmem>>, vector<1x1x1xf32>,
    } else {
    }
    return
  }
  func.func @transform_0(%arg0: i32, %arg1: i32) -> (i32, i32) {
    %c1_i32 = arith.constant 1 : i32
    %0 = arith.muli %arg0, %c1_i32 : i32
    %1 = arith.addi %0, %arg1 : i32
    %c0_i32 = arith.constant 0 : i32
    %c0_i32_0 = arith.constant 0 : i32
    return %1, %c0_i32 : i32, i32
  }
  func.func @transform_1(%arg0: i32, %arg1: i32) -> (i32, i32) {
    %c1_i32 = arith.constant 1 : i32
    %0 = arith.muli %arg0, %c1_i32 : i32
    %1 = arith.addi %0, %arg1 : i32
    %c0_i32 = arith.constant 0 : i32
    %c0_i32_0 = arith.constant 0 : i32
    return %1, %c0_i32 : i32, i32
  }
  func.func @transform_2(%arg0: i32, %arg1: i32) -> (i32, i32, i32) {
    %c0_i32 = arith.constant 0 : i32
    %c0_i32_0 = arith.constant 0 : i32
    %c0_i32_1 = arith.constant 0 : i32
    return %arg0, %c0_i32, %c0_i32_0 : i32, i32, i32
  }
}

</mosaic_0001>

<llo_original>
// kernel: content_mse.1
$region0: #{content_mse.1}
  #allocation0 [shape = 'u32[]', space=smem, size = 0x4, offset = 0x4, fixed_abs, tag = 'smem constant byte address 0x4 - core index']
  #allocation1 [shape = 'u32[144,128]{1,0:T(1,128)}', space=vmem, size = 0x12000, scoped, tag = 'internal scratch']
  #allocation2 [shape = 'f32[8,128]{1,0:T(8,128)}', space=vmem, size = 0x1000, scoped, tag = 'scratch operand']
  %s0 = inlined_call_operand.vmem [shape: f32[16,128], index: 0, kind: input, shape index: {}]
  %s1 = inlined_call_operand.vmem [shape: f32[16,128], index: 1, kind: input, shape index: {}]
  %s2 = inlined_call_operand.hbm [shape: f32[1,1,1], index: 2, kind: output, shape index: {}]
  %s3 = sld [smem:[#allocation0]]
  $region26: #{content_mse.1} parent=0
    _
  %s5 = ssub.s32 1, %s3
  %s6 = scalar_select 0, %s5, %s3
  $region1: #{content_mse.1} parent=0
    #allocation3 [shape = 'u8[512]{0}', space=vmem, size = 0x400, scoped, tag = 'output window, operand 0, single buffered']
    #allocation4 [shape = 's32[1]{0}', space=sflag, size = 0x4, scoped, tag = 'scoped memory for content_mse.1']
    %7 = vsyncpa [#allocation4], 0
    // Predicated region
    $region2: #{content_mse.1} parent=1 // pred_check
      _
    $region3: #{content_mse.1} parent=1 // pred_check_branch
      %9 = sbr.rel (0) target = $region5
    $region4: #{content_mse.1} parent=1 // pred_region
      %s10 = sadd.s32 0, 0
      %s11 = smul.u32 2, %s10
      %p12 = scmp.lt.s32.totalorder %s11, 1
      %s13 = scalar_select %p12, %s11, 1
      %s14 = smul.addr %s13, 8
      %s15 = scalar_lea.vmem %s0, %s14
      %s16 = sadd.s32 0, 0
      %s17 = smul.u32 2, %s16
    $region5: #{content_mse.1} parent=1 // pred_fallthru
      _
    // Predicated region
    $region6: #{content_mse.1} parent=1 // pred_check
      _
    $region7: #{content_mse.1} parent=1 // pred_check_branch
      %19 = sbr.rel (0) target = $region9
    $region8: #{content_mse.1} parent=1 // pred_region
      %s20 = sadd.s32 0, 0
      %s21 = smul.u32 2, %s20
      %p22 = scmp.lt.s32.totalorder %s21, 1
      %s23 = scalar_select %p22, %s21, 1
      %s24 = smul.addr %s23, 8
      %s25 = scalar_lea.vmem %s1, %s24
      %s26 = sadd.s32 0, 0
      %s27 = smul.u32 2, %s26
    $region9: #{content_mse.1} parent=1 // pred_fallthru
      _
    %s28 = sadd.s32 0, 0
    %s29 = smul.u32 2, %s28
    %p30 = scmp.lt.s32.totalorder %s29, 1
    %s31 = scalar_select %p30, %s29, 1
    %s32 = smul.addr %s31, 8
    %s33 = scalar_lea.vmem %s0, %s32
    %s34 = sadd.s32 0, 0
    %s35 = smul.u32 2, %s34
    %p36 = scmp.lt.s32.totalorder %s35, 1
    %s37 = scalar_select %p36, %s35, 1
    %s38 = smul.addr %s37, 8
    %s39 = scalar_lea.vmem %s1, %s38
    %s40 = sadd.s32 0, 0
    %s41 = smul.u32 2, %s40
    %p42 = scmp.lt.s32.totalorder %s41, 1
    %s43 = scalar_select %p42, %s41, 1
    %s44 = smul.addr %s43, 8
    %s45 = scalar_lea.vmem %s0, %s44
    %s46 = sadd.s32 0, 0
    %s47 = smul.u32 2, %s46
    %s48 = sadd.s32 0, 0
    %s49 = smul.u32 2, %s48
    %p50 = scmp.lt.s32.totalorder %s49, 1
    %s51 = scalar_select %p50, %s49, 1
    %s52 = smul.addr %s51, 8
    %s53 = scalar_lea.vmem %s1, %s52
    %s54 = sadd.s32 0, 0
    %s55 = smul.u32 2, %s54
    %p56 = scmp.eq.s32.totalorder 0, 0
    // Predicated region
    $region10: #{content_mse.1} parent=1 // pred_check
      %p57 = pneg %p56
    $region11: #{content_mse.1} parent=1 // pred_check_branch
      %59 = sbr.rel (%p57) target = $region13
    $region12: #{content_mse.1} parent=1 // pred_region
      %60 = vst [vmem:[#allocation2] sm:$0xff] 0.0
    $region13: #{content_mse.1} parent=1 // pred_fallthru
      _
    %v61 = vld [vmem:[%s45] sm:$0xff]
    %v62 = vld [vmem:[%s45 + $0x8] sm:$0xff]
    %v63 = vld [vmem:[%s53] sm:$0xff]
    %v64 = vld [vmem:[%s53 + $0x8] sm:$0xff]
    %v65 = vsub.f32 %v61, %v63
    %v66 = vsub.f32 %v62, %v64
    %v67 = vmul.f32 %v65, %v65
    %v68 = vmul.f32 %v66, %v66
    %v69 = vld [vmem:[#allocation2] sm:$0xff]
    %v70 = vadd.f32 %v67, %v68
    %v71 = vadd.f32 %v69, %v70
    %72 = vst [vmem:[#allocation2] sm:$0xff] %v71
    // Predicated region
    $region14: #{content_mse.1} parent=1 // pred_check
      %p73 = pneg %p56
    $region15: #{content_mse.1} parent=1 // pred_check_branch
      %75 = sbr.rel (%p73) target = $region17
    $region16: #{content_mse.1} parent=1 // pred_region
      %v76 = vld [vmem:[#allocation2] sm:$0xff]
      %77 = vadd.xlane.f32.xlu0 %v76
      %v78 = vpop.xlane.xlu0 %77
      %v79 = vrot.slane %v78, 4
      %v80 = vadd.f32 %v78, %v79
      %v81 = vrot.slane %v80, 2
      %v82 = vadd.f32 %v80, %v81
      %v83 = vrot.slane %v82, 1
      %v84 = vadd.f32 %v82, %v83
      %s85 = vtos %v84
      %s86 = smul.f32 %s85, 0.00048828125
      %v87 = vstv %s86
      %vm88 = vcmask 0
      %89 = vst.msk [vmem:[#allocation3] sm:$0x1] %vm88, %v87
    $region17: #{content_mse.1} parent=1 // pred_fallthru
      _
    // Predicated region
    $region18: #{content_mse.1} parent=1 // pred_check
      _
    $region19: #{content_mse.1} parent=1 // pred_check_branch
      %91 = sbr.rel (0) target = $region21
    $region20: #{content_mse.1} parent=1 // pred_region
      %s93 = ssub.s32 16, 16
      %94 = vsyncadd [#allocation4], %s93
      %s96 = sshll.u32 [#allocation3], 4
      %s97 = int_to_ptr.vmem [resolvable:$true] %s96
      %99 = dma.vmem_to_hbm [thread:$0]  %s97, 16, %s2, [#allocation4]
    $region21: #{content_mse.1} parent=1 // pred_fallthru
      _
    // Predicated region
    $region22: #{content_mse.1} parent=1 // pred_check
      _
    $region23: #{content_mse.1} parent=1 // pred_check_branch
      %101 = sbr.rel (0) target = $region25
    $region24: #{content_mse.1} parent=1 // pred_region
      %102 = dma.done [#allocation4], 16
    $region25: #{content_mse.1} parent=1 // pred_fallthru
      _
    %103 = vsyncpa [#allocation4], 1

</llo_original>
